<compile_context>
chip_gen: v6e
topology: v6e:2x2x1
jax: 0.10.0
libtpu: 0.0.40
codegen_flags: <defaults>
</compile_context>

<pallas_src>
import functools
import math

import numpy as np
import jax
import jax.numpy as jnp
from jax import lax
from jax.experimental import pallas as pl
from jax.experimental.pallas import tpu as pltpu

LN_EPS = 1e-5                          # nn.LayerNorm default
VMEM_LIMIT_BYTES = 64 * 1024 * 1024    # v5e/v6e: 128 MiB physical; keep block budget modest for v7x


# ------------------------------ helpers -------------------------------------

def _pick_tile(dim, pref, mult):
    """Largest tile <= pref that divides dim and is a multiple of `mult`, else full dim."""
    if dim <= pref:
        return dim
    t = (pref // mult) * mult
    while t >= mult:
        if dim % t == 0:
            return t
        t -= mult
    return dim


def _itemsize(dt):
    return np.dtype(dt).itemsize


def _check_vmem(block_bytes, name):
    # every non-constant block is double-buffered by the auto-pipeline
    need = 2 * block_bytes
    assert need <= VMEM_LIMIT_BYTES, (
        f"{name}: double-buffered block footprint {need} B exceeds vmem limit "
        f"{VMEM_LIMIT_BYTES} B; shrink tile sizes")


def _cparams(*sem):
    return pltpu.CompilerParams(
        dimension_semantics=sem,
        vmem_limit_bytes=VMEM_LIMIT_BYTES,
    )


# ------------------------------ Pallas kernels ------------------------------

def _norm_linear_kernel(x_ref, g_ref, b_ref, w_ref, bias_ref, o_ref, *, eps):
    # y = LayerNorm(x; g, b) @ W + bias      x: (tm, D) f32, W: (D, tn) bf16
    x = x_ref[...].astype(jnp.float32)
    mean = jnp.mean(x, axis=-1, keepdims=True)
    xc = x - mean
    var = jnp.mean(xc * xc, axis=-1, keepdims=True)
    xn = xc * lax.rsqrt(var + eps) * g_ref[...] + b_ref[...]
    y = jnp.dot(xn.astype(w_ref.dtype), w_ref[...],
                preferred_element_type=jnp.float32) + bias_ref[...]
    o_ref[...] = y.astype(o_ref.dtype)


def _linear_kernel(x_ref, w_ref, bias_ref, o_ref):
    # y = x @ W + bias                        x: (tm, D) f32, W: (D, tn) bf16
    y = jnp.dot(x_ref[...].astype(w_ref.dtype), w_ref[...],
                preferred_element_type=jnp.float32) + bias_ref[...]
    o_ref[...] = y.astype(o_ref.dtype)


def _mha_kernel(q_ref, kv_ref, mask_ref, wo_ref, bo_ref, o_ref,
                *, heads, dk, q_off, k_off, v_off):
    # q_ref : (tq, Wq) bf16 -- columns [q_off : q_off+D] hold the (scale-folded) Q projection
    # kv_ref: (Sk, Wkv) bf16 -- column ranges k_off / v_off hold K / V projections
    # mask  : (mq, Sk) int8, 0 = masked;  wo: (D, D) bf16;  o: (tq, D) f32
    d = heads * dk
    bias = jnp.where(mask_ref[...].astype(jnp.float32) == 0.0,
                     jnp.float32(-1e9), jnp.float32(0.0))               # (mq, Sk)
    q = q_ref[:, q_off:q_off + d]
    k = kv_ref[:, k_off:k_off + d]
    v = kv_ref[:, v_off:v_off + d]

    # TODO(synk): with heads >= 8 switch to lax.fori_loop(unroll=True) over pl.ds lane slices
    #             to bound live ranges; for long Sk use an online-softmax KV loop (flash).
    ctxs = []
    for h in range(heads):
        sl = slice(h * dk, (h + 1) * dk)
        s = lax.dot_general(q[:, sl], k[:, sl], (((1,), (1,)), ((), ())),
                            preferred_element_type=jnp.float32)          # (tq, Sk)
        s = s + bias
        m = jnp.max(s, axis=-1, keepdims=True)
        p = jnp.exp(s - m)
        inv_l = pl.reciprocal(jnp.sum(p, axis=-1, keepdims=True), approx=True)
        ctx = jnp.dot(p.astype(v.dtype), v[:, sl],
                      preferred_element_type=jnp.float32) * inv_l         # (tq, dk) f32
        ctxs.append(ctx.astype(wo_ref.dtype))

    # all heads' contexts concatenated along lanes -> single full-K output-projection matmul
    ctx_all = jnp.concatenate(ctxs, axis=-1)                              # (tq, D) bf16
    out = jnp.dot(ctx_all, wo_ref[...], preferred_element_type=jnp.float32)
    o_ref[...] = (out + bo_ref[...]).astype(o_ref.dtype)


def _norm_ffn_kernel(x_ref, g_ref, b_ref, w1_ref, b1_ref, w2_ref, b2_ref,
                     o_ref, xn_ref, acc_ref, *, eps):
    # o = relu(LayerNorm(x) @ W1 + b1) @ W2 + b2, with d_ff as a tiled reduction axis.
    @pl.when(pl.program_id(1) == 0)
    def _():
        x = x_ref[...].astype(jnp.float32)
        mean = jnp.mean(x, axis=-1, keepdims=True)
        xc = x - mean
        var = jnp.mean(xc * xc, axis=-1, keepdims=True)
        xn = xc * lax.rsqrt(var + eps) * g_ref[...] + b_ref[...]
        xn_ref[...] = xn.astype(xn_ref.dtype)          # bf16 matmul operand, reused across d_ff
        acc_ref[...] = jnp.zeros_like(acc_ref)

    h = jnp.dot(xn_ref[...], w1_ref[...], preferred_element_type=jnp.float32) + b1_ref[...]
    h = jnp.maximum(h, 0.0).astype(w2_ref.dtype)
    acc_ref[...] += jnp.dot(h, w2_ref[...], preferred_element_type=jnp.float32)

    @pl.when(pl.program_id(1) == pl.num_programs(1) - 1)
    def _():
        o_ref[...] = (acc_ref[...] + b2_ref[...]).astype(o_ref.dtype)


# ----------------------------- kernel wrappers ------------------------------

def pallas_norm_linear(x2d, g, b, w, bias, *, out_dtype=jnp.bfloat16, eps=LN_EPS):
    n, d = x2d.shape
    dout = w.shape[1]
    tm = _pick_tile(n, 512, 8)           # big row tiles: ~85% HBM roofline on v5e/v6e
    tn = _pick_tile(dout, 1024, 128)     # column tiling so huge weights need not be fully resident
    _check_vmem(tm * d * 4 + 2 * d * 4 + d * tn * 2 + tn * 4 + tm * tn * _itemsize(out_dtype),
                "pallas_norm_linear")
    kern = functools.partial(_norm_linear_kernel, eps=eps)
    return pl.pallas_call(
        kern,
        out_shape=jax.ShapeDtypeStruct((n, dout), out_dtype),
        grid=(n // tm, dout // tn),
        in_specs=[
            pl.BlockSpec((tm, d), lambda i, j: (i, 0)),
            pl.BlockSpec((1, d), lambda i, j: (0, 0)),
            pl.BlockSpec((1, d), lambda i, j: (0, 0)),
            pl.BlockSpec((d, tn), lambda i, j: (0, j)),
            pl.BlockSpec((1, tn), lambda i, j: (0, j)),
        ],
        out_specs=pl.BlockSpec((tm, tn), lambda i, j: (i, j)),
        compiler_params=_cparams("parallel", "parallel"),
    )(x2d, g.reshape(1, -1), b.reshape(1, -1), w, bias.reshape(1, -1))


def pallas_linear(x2d, w, bias, *, out_dtype=jnp.bfloat16):
    n, d = x2d.shape
    dout = w.shape[1]
    tm = _pick_tile(n, 512, 8)
    tn = _pick_tile(dout, 1024, 128)
    _check_vmem(tm * d * 4 + d * tn * 2 + tn * 4 + tm * tn * _itemsize(out_dtype),
                "pallas_linear")
    return pl.pallas_call(
        _linear_kernel,
        out_shape=jax.ShapeDtypeStruct((n, dout), out_dtype),
        grid=(n // tm, dout // tn),
        in_specs=[
            pl.BlockSpec((tm, d), lambda i, j: (i, 0)),
            pl.BlockSpec((d, tn), lambda i, j: (0, j)),
            pl.BlockSpec((1, tn), lambda i, j: (0, j)),
        ],
        out_specs=pl.BlockSpec((tm, tn), lambda i, j: (i, j)),
        compiler_params=_cparams("parallel", "parallel"),
    )(x2d, w, bias.reshape(1, -1))


def pallas_mha(q_arr, kv_arr, mask_i8, wo, bo, heads, *, q_off, k_off, v_off):
    """Multi-head attention + fused output projection.

    q_arr : (B, Sq, Wq)  bf16 -- columns [q_off : q_off+D] hold the (scale-folded) Q projection
    kv_arr: (B, Sk, Wkv) bf16 -- columns [k_off : k_off+D] / [v_off : v_off+D] hold K / V
    mask  : (B, 1 or Sq, Sk) int8 (0 = masked)
    """
    B, Sq, Wq = q_arr.shape
    _, Sk, Wkv = kv_arr.shape
    D = wo.shape[0]
    dk = D // heads
    Mq = mask_i8.shape[1]
    assert Mq in (1, Sq), "attention mask must be (B, 1, Sk) or (B, Sq, Sk)"

    tq = _pick_tile(Sq, 256, 8)
    mq = tq if Mq == Sq else 1
    mask_map = (lambda b, qi: (b, qi, 0)) if Mq == Sq else (lambda b, qi: (b, 0, 0))

    _check_vmem(tq * Wq * 2 + Sk * Wkv * 2 + mq * Sk + D * D * 2 + D * 4 + tq * D * 4,
                "pallas_mha")

    kern = functools.partial(_mha_kernel, heads=heads, dk=dk,
                             q_off=q_off, k_off=k_off, v_off=v_off)
    return pl.pallas_call(
        kern,
        out_shape=jax.ShapeDtypeStruct((B, Sq, D), jnp.float32),
        grid=(B, Sq // tq),
        in_specs=[
            pl.BlockSpec((pl.Squeezed(), tq, Wq), lambda b, qi: (b, qi, 0)),
            pl.BlockSpec((pl.Squeezed(), Sk, Wkv), lambda b, qi: (b, 0, 0)),
            pl.BlockSpec((pl.Squeezed(), mq, Sk), mask_map),
            pl.BlockSpec((D, D), lambda b, qi: (0, 0)),
            pl.BlockSpec((1, D), lambda b, qi: (0, 0)),
        ],
        out_specs=pl.BlockSpec((pl.Squeezed(), tq, D), lambda b, qi: (b, qi, 0)),
        compiler_params=_cparams("parallel", "parallel"),
    )(q_arr, kv_arr, mask_i8, wo, bo.reshape(1, -1))


def pallas_norm_ffn(x2d, g, b, w1, b1, w2, b2, *, eps=LN_EPS):
    n, d = x2d.shape
    dff = w1.shape[1]
    tm = _pick_tile(n, 512, 8)
    tf = _pick_tile(dff, 512, 128)   # keep <=512 so double-buffered W1/W2 fit v7x's 64 MiB VMEM
    _check_vmem(tm * d * 4 + 2 * d * 4 + d * tf * 2 + tf * 4 + tf * d * 2 + d * 4
                + tm * d * 4 + tm * d * 2 + tm * d * 4,
                "pallas_norm_ffn")
    kern = functools.partial(_norm_ffn_kernel, eps=eps)
    return pl.pallas_call(
        kern,
        out_shape=jax.ShapeDtypeStruct((n, d), jnp.float32),
        grid=(n // tm, dff // tf),
        in_specs=[
            pl.BlockSpec((tm, d), lambda i, f: (i, 0)),
            pl.BlockSpec((1, d), lambda i, f: (0, 0)),
            pl.BlockSpec((1, d), lambda i, f: (0, 0)),
            pl.BlockSpec((d, tf), lambda i, f: (0, f)),
            pl.BlockSpec((1, tf), lambda i, f: (0, f)),
            pl.BlockSpec((tf, d), lambda i, f: (f, 0)),
            pl.BlockSpec((1, d), lambda i, f: (0, 0)),
        ],
        out_specs=pl.BlockSpec((tm, d), lambda i, f: (i, 0)),
        scratch_shapes=[pltpu.VMEM((tm, d), jnp.bfloat16),   # normalized x, reused across d_ff tiles
                        pltpu.VMEM((tm, d), jnp.float32)],   # f32 accumulator
        compiler_params=_cparams("parallel", "arbitrary"),
    )(x2d, g.reshape(1, -1), b.reshape(1, -1),
      w1, b1.reshape(1, -1), w2, b2.reshape(1, -1))


# --------------------------- decoder layer forward ---------------------------

def decoder_layer_forward(x, memory, src_mask, tgt_mask, kp, heads):
    B, St, D = x.shape
    Sm = memory.shape[1]

    # compact int8 masks; expanded to the -1e9 additive bias inside the attention kernels
    tgt_mask_i8 = (tgt_mask != 0).astype(jnp.int8)
    src_mask_i8 = (src_mask != 0).astype(jnp.int8)

    x2d = x.reshape(B * St, D)
    m2d = memory.reshape(B * Sm, D)

    # sublayer0: dropout(self_attn(norm0(x), norm0(x), norm0(x), tgt_mask)) -- no residual
    qkv = pallas_norm_linear(x2d, kp["ln0_g"], kp["ln0_b"],
                             kp["w_qkv_self"], kp["b_qkv_self"])            # (B*St, 3D) bf16
    x_sa = pallas_mha(qkv.reshape(B, St, 3 * D), qkv.reshape(B, St, 3 * D),
                      tgt_mask_i8, kp["wo_self"], kp["bo_self"], heads,
                      q_off=0, k_off=D, v_off=2 * D)                        # (B, St, D) f32
    x2d = x_sa.reshape(B * St, D)

    # sublayer1: dropout(src_attn(norm1(x), memory, memory, src_mask)) -- memory not normed
    q = pallas_norm_linear(x2d, kp["ln1_g"], kp["ln1_b"],
                           kp["w_q_src"], kp["b_q_src"])                    # (B*St, D) bf16
    kv = pallas_linear(m2d, kp["w_kv_src"], kp["b_kv_src"])                 # (B*Sm, 2D) bf16
    x_ca = pallas_mha(q.reshape(B, St, D), kv.reshape(B, Sm, 2 * D),
                      src_mask_i8, kp["wo_src"], kp["bo_src"], heads,
                      q_off=0, k_off=0, v_off=D)
    x2d = x_ca.reshape(B * St, D)

    # sublayer1 AGAIN (verbatim from the reference module): dropout(pos_ffn(norm1(x)))
    out = pallas_norm_ffn(x2d, kp["ln1_g"], kp["ln1_b"],
                          kp["w1"], kp["b1"], kp["w2"], kp["b2"])
    return out.reshape(B, St, D)


# --------------------------------- params ------------------------------------

def init_params(key, d_model, d_ff):
    """Logical (PyTorch-layout, f32) parameters; weights stored (in, out) == W^T."""
    def lin(k, din, dout):
        kw, kb = jax.random.split(k)
        w = jax.random.normal(kw, (din, dout), jnp.float32) * 0.05
        b = jax.random.normal(kb, (dout,), jnp.float32) * 0.05
        return w, b

    ks = jax.random.split(key, 12)
    p = {}
    for i, name in enumerate(["q_self", "k_self", "v_self", "o_self",
                              "q_src", "k_src", "v_src", "o_src"]):
        w, b = lin(ks[i], d_model, d_model)
        p["w" + name] = w
        p["b" + name] = b
    p["w1"], p["b1"] = lin(ks[8], d_model, d_ff)
    p["w2"], p["b2"] = lin(ks[9], d_ff, d_model)
    p["ln0_g"] = 1.0 + 0.1 * jax.random.normal(ks[10], (d_model,), jnp.float32)
    p["ln0_b"] = 0.1 * jax.random.normal(jax.random.fold_in(ks[10], 1), (d_model,), jnp.float32)
    p["ln1_g"] = 1.0 + 0.1 * jax.random.normal(ks[11], (d_model,), jnp.float32)
    p["ln1_b"] = 0.1 * jax.random.normal(jax.random.fold_in(ks[11], 1), (d_model,), jnp.float32)
    return p


def prepare_kernel_params(p, heads):
    """One-time host-side packing for the kernels:
       * 1/sqrt(dk) softmax scale folded into the Q projection weights/bias,
       * Q|K|V and K|V weights packed so each source row is projected with one matmul,
       * matmul weights cast to bf16 (f32 accumulation happens inside the kernels)."""
    d = p["wq_self"].shape[0]
    dk = d // heads
    scale = jnp.float32(1.0 / math.sqrt(dk))
    bf = lambda a: a.astype(jnp.bfloat16)
    return dict(
        w_qkv_self=bf(jnp.concatenate([p["wq_self"] * scale, p["wk_self"], p["wv_self"]], axis=1)),
        b_qkv_self=jnp.concatenate([p["bq_self"] * scale, p["bk_self"], p["bv_self"]], axis=0),
        wo_self=bf(p["wo_self"]), bo_self=p["bo_self"],
        w_q_src=bf(p["wq_src"] * scale), b_q_src=p["bq_src"] * scale,
        w_kv_src=bf(jnp.concatenate([p["wk_src"], p["wv_src"]], axis=1)),
        b_kv_src=jnp.concatenate([p["bk_src"], p["bv_src"]], axis=0),
        wo_src=bf(p["wo_src"]), bo_src=p["bo_src"],
        w1=bf(p["w1"]), b1=p["b1"], w2=bf(p["w2"]), b2=p["b2"],
        ln0_g=p["ln0_g"], ln0_b=p["ln0_b"], ln1_g=p["ln1_g"], ln1_b=p["ln1_b"],
    )


# ------------------------------ pure-JAX reference ---------------------------

def _layer_ref(x, memory, src_mask, tgt_mask, p, heads):
    B, St, D = x.shape
    dk = D // heads

    def ln(t, g, b):
        mean = t.mean(-1, keepdims=True)
        var = ((t - mean) ** 2).mean(-1, keepdims=True)
        return (t - mean) / jnp.sqrt(var + LN_EPS) * g + b

    def mha(q_in, k_in, v_in, mask, wq, bq, wk, bk, wv, bv, wo, bo):
        Sq, Sk = q_in.shape[1], k_in.shape[1]
        q = (q_in @ wq + bq).reshape(B, Sq, heads, dk).transpose(0, 2, 1, 3)
        k = (k_in @ wk + bk).reshape(B, Sk, heads, dk).transpose(0, 2, 1, 3)
        v = (v_in @ wv + bv).reshape(B, Sk, heads, dk).transpose(0, 2, 1, 3)
        s = jnp.einsum("bhqd,bhkd->bhqk", q, k) / math.sqrt(dk)
        s = jnp.where(mask[:, None, :, :] == 0, -1e9, s)
        pa = jax.nn.softmax(s, axis=-1)
        ctx = jnp.einsum("bhqk,bhkd->bhqd", pa, v).transpose(0, 2, 1, 3).reshape(B, Sq, D)
        return ctx @ wo + bo

    xn = ln(x, p["ln0_g"], p["ln0_b"])
    x = mha(xn, xn, xn, tgt_mask, p["wq_self"], p["bq_self"], p["wk_self"], p["bk_self"],
            p["wv_self"], p["bv_self"], p["wo_self"], p["bo_self"])
    xn = ln(x, p["ln1_g"], p["ln1_b"])
    x = mha(xn, memory, memory, src_mask, p["wq_src"], p["bq_src"], p["wk_src"], p["bk_src"],
            p["wv_src"], p["bv_src"], p["wo_src"], p["bo_src"])
    xn = ln(x, p["ln1_g"], p["ln1_b"])
    h = jnp.maximum(xn @ p["w1"] + p["b1"], 0.0)
    return h @ p["w2"] + p["b2"]


# ----------------------------------- main -------------------------------------

if __name__ == "__main__":
    B, St, Sm, D, H, FF = 2, 8, 16, 32, 4, 64
    key = jax.random.PRNGKey(0)
    kx, km, kp = jax.random.split(key, 3)

    x = jax.random.normal(kx, (B, St, D), jnp.float32)
    memory = jax.random.normal(km, (B, Sm, D), jnp.float32)
    # target mask: causal (B, St, St); source mask: (B, 1, Sm), batch 1 masks the last 4 keys
    tgt_mask = jnp.tile(jnp.tril(jnp.ones((St, St), jnp.float32))[None], (B, 1, 1))
    src_mask = jnp.ones((B, 1, Sm), jnp.float32).at[1, 0, Sm - 4:].set(0.0)

    params = init_params(kp, D, FF)
    kparams = prepare_kernel_params(params, H)

    out = decoder_layer_forward(x, memory, src_mask, tgt_mask, kparams, H)
    out = jax.block_until_ready(out)

    ref = _layer_ref(x, memory, src_mask, tgt_mask, params, H)
    assert out.shape == (B, St, D) and out.dtype == jnp.float32
    err = float(jnp.max(jnp.abs(out - ref)))
    # tolerance loosened vs the f32 reference: matmul operands are bf16 (f32 accumulation)
    # and the softmax denominator uses the EUP approximate reciprocal
    assert err < 5e-2, f"mismatch vs f32 JAX reference: max abs err = {err}"
    print("KERNEL_OK")
</pallas_src>

<mosaic_0001>
module attributes {stable_mosaic.version = 11 : i64} {
  func.func @_norm_linear_kernel(%arg0: i32, %arg1: i32, %arg2: memref<16x32xf32, #tpu.memory_space<vmem>>, %arg3: memref<1x32xf32, #tpu.memory_space<vmem>>, %arg4: memref<1x32xf32, #tpu.memory_space<vmem>>, %arg5: memref<32x96xbf16, #tpu.memory_space<vmem>>, %arg6: memref<1x96xf32, #tpu.memory_space<vmem>>, %arg7: memref<16x96xbf16, #tpu.memory_space<vmem>>) attributes {dimension_semantics = [#tpu.dimension_semantics<parallel>, #tpu.dimension_semantics<parallel>], iteration_bounds = array<i64: 1, 1>, scalar_prefetch = 0 : i64, scratch_operands = 0 : i64, tpu.core_type = #tpu.core_type<tc>, window_params = [{transform_indices = @transform_0, window_bounds = array<i64: 16, 32>}, {pipeline_mode = #tpu.pipeline_mode<synchronous>, transform_indices = @transform_1, window_bounds = array<i64: 1, 32>}, {pipeline_mode = #tpu.pipeline_mode<synchronous>, transform_indices = @transform_2, window_bounds = array<i64: 1, 32>}, {transform_indices = @transform_3, window_bounds = array<i64: 32, 96>}, {transform_indices = @transform_4, window_bounds = array<i64: 1, 96>}, {transform_indices = @transform_5, window_bounds = array<i64: 16, 96>}]} {
    %c0 = arith.constant 0 : index
    %c0_0 = arith.constant 0 : index
    %0 = vector.load %arg2[%c0, %c0_0] : memref<16x32xf32, #tpu.memory_space<vmem>>, vector<16x32xf32>
    %cst = arith.constant dense<0.000000e+00> : vector<16xf32>
    %1 = vector.multi_reduction <add>, %0, %cst [1] : vector<16x32xf32> to vector<16xf32>
    %2 = vector.shape_cast %1 : vector<16xf32> to vector<16x1xf32>
    %cst_1 = arith.constant 3.200000e+01 : f32
    %3 = vector.broadcast %cst_1 : f32 to vector<16x1xf32>
    %4 = arith.divf %2, %3 : vector<16x1xf32>
    %5 = vector.broadcast %4 : vector<16x1xf32> to vector<16x32xf32>
    %6 = arith.subf %0, %5 : vector<16x32xf32>
    %7 = arith.mulf %6, %6 : vector<16x32xf32>
    %cst_2 = arith.constant dense<0.000000e+00> : vector<16xf32>
    %8 = vector.multi_reduction <add>, %7, %cst_2 [1] : vector<16x32xf32> to vector<16xf32>
    %9 = vector.shape_cast %8 : vector<16xf32> to vector<16x1xf32>
    %cst_3 = arith.constant 3.200000e+01 : f32
    %10 = vector.broadcast %cst_3 : f32 to vector<16x1xf32>
    %11 = arith.divf %9, %10 : vector<16x1xf32>
    %cst_4 = arith.constant 9.99999974E-6 : f32
    %12 = vector.broadcast %cst_4 : f32 to vector<16x1xf32>
    %13 = arith.addf %11, %12 : vector<16x1xf32>
    %14 = math.rsqrt %13 : vector<16x1xf32>
    %15 = vector.broadcast %14 : vector<16x1xf32> to vector<16x32xf32>
    %16 = arith.mulf %6, %15 : vector<16x32xf32>
    %c0_5 = arith.constant 0 : index
    %c0_6 = arith.constant 0 : index
    %17 = vector.load %arg3[%c0_5, %c0_6] : memref<1x32xf32, #tpu.memory_space<vmem>>, vector<1x32xf32>
    %18 = vector.broadcast %17 : vector<1x32xf32> to vector<16x32xf32>
    %19 = arith.mulf %16, %18 : vector<16x32xf32>
    %c0_7 = arith.constant 0 : index
    %c0_8 = arith.constant 0 : index
    %20 = vector.load %arg4[%c0_7, %c0_8] : memref<1x32xf32, #tpu.memory_space<vmem>>, vector<1x32xf32>
    %21 = vector.broadcast %20 : vector<1x32xf32> to vector<16x32xf32>
    %22 = arith.addf %19, %21 : vector<16x32xf32>
    %23 = arith.truncf %22 : vector<16x32xf32> to vector<16x32xbf16>
    %c0_9 = arith.constant 0 : index
    %c0_10 = arith.constant 0 : index
    %24 = vector.load %arg5[%c0_9, %c0_10] : memref<32x96xbf16, #tpu.memory_space<vmem>>, vector<32x96xbf16>
    %cst_11 = arith.constant dense<0.000000e+00> : vector<16x96xf32>
    %25 = tpu.matmul %23, %24, %cst_11 {dimension_numbers = #tpu.dot_dimension_numbers<[1], [0], [0], [1], [0, 0, 1, 1], [], []>} : vector<16x32xbf16>, vector<32x96xbf16>, vector<16x96xf32> -> vector<16x96xf32>
    %c0_12 = arith.constant 0 : index
    %c0_13 = arith.constant 0 : index
    %26 = vector.load %arg6[%c0_12, %c0_13] : memref<1x96xf32, #tpu.memory_space<vmem>>, vector<1x96xf32>
    %27 = vector.broadcast %26 : vector<1x96xf32> to vector<16x96xf32>
    %28 = arith.addf %25, %27 : vector<16x96xf32>
    %29 = arith.truncf %28 : vector<16x96xf32> to vector<16x96xbf16>
    %c0_14 = arith.constant 0 : index
    %c0_15 = arith.constant 0 : index
    %30 = vector.load %arg7[%c0_14, %c0_15] : memref<16x96xbf16, #tpu.memory_space<vmem>>, vector<16x96xbf16>
    tpu.vector_store %arg7[%c0_14, %c0_15], %29 {strides = array<i32>} : memref<16x96xbf16, #tpu.memory_space<vmem>>, vector<16x96xbf16>,
    return
  }
  func.func @transform_0(%arg0: i32, %arg1: i32) -> (i32, i32) {
    %c0_i32 = arith.constant 0 : i32
    %c0_i32_0 = arith.constant 0 : i32
    return %arg0, %c0_i32 : i32, i32
  }
  func.func @transform_1(%arg0: i32, %arg1: i32) -> (i32, i32) {
    %c0_i32 = arith.constant 0 : i32
    %c0_i32_0 = arith.constant 0 : i32
    %c0_i32_1 = arith.constant 0 : i32
    return %c0_i32, %c0_i32_0 : i32, i32
  }
  func.func @transform_2(%arg0: i32, %arg1: i32) -> (i32, i32) {
    %c0_i32 = arith.constant 0 : i32
    %c0_i32_0 = arith.constant 0 : i32
    %c0_i32_1 = arith.constant 0 : i32
    return %c0_i32, %c0_i32_0 : i32, i32
  }
  func.func @transform_3(%arg0: i32, %arg1: i32) -> (i32, i32) {
    %c0_i32 = arith.constant 0 : i32
    %c0_i32_0 = arith.constant 0 : i32
    return %c0_i32, %arg1 : i32, i32
  }
  func.func @transform_4(%arg0: i32, %arg1: i32) -> (i32, i32) {
    %c0_i32 = arith.constant 0 : i32
    %c0_i32_0 = arith.constant 0 : i32
    return %c0_i32, %arg1 : i32, i32
  }
  func.func @transform_5(%arg0: i32, %arg1: i32) -> (i32, i32) {
    %c0_i32 = arith.constant 0 : i32
    return %arg0, %arg1 : i32, i32
  }
}

</mosaic_0001>

<llo_original>
// kernel: tpu_custom_call.1
$region0: #{tpu_custom_call.1}
  #allocation0 [shape = 'u32[]', space=smem, size = 0x4, offset = 0x4, fixed_abs, tag = 'smem constant byte address 0x4 - core index']
  #allocation1 [shape = 'u32[144,128]{1,0:T(1,128)}', space=vmem, size = 0x12000, scoped, tag = 'internal scratch']
  %s0 = inlined_call_operand.hbm [shape: f32[16,32], index: 0, kind: input, shape index: {}]
  %s1 = inlined_call_operand.vmem [shape: f32[1,32], index: 1, kind: input, shape index: {}]
  %s2 = inlined_call_operand.vmem [shape: f32[1,32], index: 2, kind: input, shape index: {}]
  %s3 = inlined_call_operand.hbm [shape: bf16[32,96], index: 3, kind: input, shape index: {}]
  %s4 = inlined_call_operand.vmem [shape: f32[1,96], index: 4, kind: input, shape index: {}]
  %s5 = inlined_call_operand.hbm [shape: bf16[16,96], index: 5, kind: output, shape index: {}]
  %s6 = sld [smem:[#allocation0]]
  $region38: #{tpu_custom_call.1} parent=0
    _
  %s8 = ssub.s32 1, %s6
  %s9 = scalar_select 0, %s8, %s6
  $region1: #{tpu_custom_call.1} parent=0
    #allocation2 [shape = 'u8[8192]{0}', space=vmem, size = 0x2000, scoped, tag = 'input window, operand 0, single buffered']
    #allocation3 [shape = 's32[1]{0}', space=sflag, size = 0x4, scoped, tag = 'scoped memory for tpu_custom_call.1']
    #allocation4 [shape = 's32[1]{0}', space=sflag, size = 0x4, scoped, tag = 'scoped memory for tpu_custom_call.1']
    #allocation5 [shape = 'u8[8192]{0}', space=vmem, size = 0x2000, scoped, tag = 'input window, operand 3, single buffered']
    #allocation6 [shape = 's32[1]{0}', space=sflag, size = 0x4, scoped, tag = 'scoped memory for tpu_custom_call.1']
    #allocation7 [shape = 'u8[4096]{0}', space=vmem, size = 0x1000, scoped, tag = 'output window, operand 0, single buffered']
    %10 = vsyncpa [#allocation3], 0
    %11 = vsyncpa [#allocation6], 0
    %12 = vsyncpa [#allocation4], 0
    // Predicated region
    $region2: #{tpu_custom_call.1} parent=1 // pred_check
      _
    $region3: #{tpu_custom_call.1} parent=1 // pred_check_branch
      %14 = sbr.rel (0) target = $region5
    $region4: #{tpu_custom_call.1} parent=1 // pred_region
      %s16 = ssub.s32 256, 256
      %17 = vsyncadd [#allocation3], %s16
      %s18 = sshll.u32 [#allocation2], 4
      %s19 = int_to_ptr.vmem [resolvable:$true] %s18
      %24 = dma.hbm_to_vmem [thread:$0]  %s0, 256, %s19, [#allocation3], 128, 128, 8
    $region5: #{tpu_custom_call.1} parent=1 // pred_fallthru
      _
    // Predicated region
    $region6: #{tpu_custom_call.1} parent=1 // pred_check
      _
    $region7: #{tpu_custom_call.1} parent=1 // pred_check_branch
      %26 = sbr.rel (0) target = $region9
    $region8: #{tpu_custom_call.1} parent=1 // pred_region
      _
    $region9: #{tpu_custom_call.1} parent=1 // pred_fallthru
      _
    // Predicated region
    $region10: #{tpu_custom_call.1} parent=1 // pred_check
      _
    $region11: #{tpu_custom_call.1} parent=1 // pred_check_branch
      %28 = sbr.rel (0) target = $region13
    $region12: #{tpu_custom_call.1} parent=1 // pred_region
      _
    $region13: #{tpu_custom_call.1} parent=1 // pred_fallthru
      _
    // Predicated region
    $region14: #{tpu_custom_call.1} parent=1 // pred_check
      _
    $region15: #{tpu_custom_call.1} parent=1 // pred_check_branch
      %30 = sbr.rel (0) target = $region17
    $region16: #{tpu_custom_call.1} parent=1 // pred_region
      %s32 = ssub.s32 256, 256
      %33 = vsyncadd [#allocation6], %s32
      %s34 = sshll.u32 [#allocation5], 4
      %s35 = int_to_ptr.vmem [resolvable:$true] %s34
      %40 = dma.hbm_to_vmem [thread:$0]  %s3, 256, %s35, [#allocation6], 64, 64, 4
    $region17: #{tpu_custom_call.1} parent=1 // pred_fallthru
      _
    // Predicated region
    $region18: #{tpu_custom_call.1} parent=1 // pred_check
      _
    $region19: #{tpu_custom_call.1} parent=1 // pred_check_branch
      %42 = sbr.rel (0) target = $region21
    $region20: #{tpu_custom_call.1} parent=1 // pred_region
      _
    $region21: #{tpu_custom_call.1} parent=1 // pred_fallthru
      _
    // Predicated region
    $region22: #{tpu_custom_call.1} parent=1 // pred_check
      _
    $region23: #{tpu_custom_call.1} parent=1 // pred_check_branch
      %44 = sbr.rel (0) target = $region25
    $region24: #{tpu_custom_call.1} parent=1 // pred_region
      %45 = dma.done [#allocation3], 256
    $region25: #{tpu_custom_call.1} parent=1 // pred_fallthru
      _
    // Predicated region
    $region26: #{tpu_custom_call.1} parent=1 // pred_check
      _
    $region27: #{tpu_custom_call.1} parent=1 // pred_check_branch
      %47 = sbr.rel (0) target = $region29
    $region28: #{tpu_custom_call.1} parent=1 // pred_region
      %48 = dma.done [#allocation6], 256
    $region29: #{tpu_custom_call.1} parent=1 // pred_fallthru
      _
    %v50 = vld [vmem:[#allocation2] sm:$0xff]
    %v51 = vld [vmem:[#allocation2 + $0x8] sm:$0xff]
    %vm52 = vcmask 261120
    %v53 = vsel %vm52, %v50, 0.0
    %54 = vadd.xlane.f32.xlu0 %v53
    %v55 = vpop.xlane.xlu0 %54
    %v56 = vsel %vm52, %v51, 0.0
    %57 = vadd.xlane.f32.xlu0 %v56
    %v58 = vpop.xlane.xlu0 %57
    %v59 = vrcp.pop 32.0
    %v60 = vmul.f32 %v55, %v59
    %v61 = vmul.f32 %v58, %v59
    %v62 = vsub.f32 %v50, %v60
    %v63 = vsub.f32 %v51, %v61
    %v64 = vmul.f32 %v62, %v62
    %v65 = vmul.f32 %v63, %v63
    %v66 = vsel %vm52, %v64, 0.0
    %67 = vadd.xlane.f32.xlu0 %v66
    %v68 = vpop.xlane.xlu0 %67
    %v69 = vsel %vm52, %v65, 0.0
    %70 = vadd.xlane.f32.xlu0 %v69
    %v71 = vpop.xlane.xlu0 %70
    %v72 = vmul.f32 %v68, %v59
    %v73 = vmul.f32 %v71, %v59
    %v74 = vadd.f32 %v72, 1e-05
    %v75 = vadd.f32 %v73, 1e-05
    %v76 = vrsqrt.pop %v74
    %v77 = vrsqrt.pop %v75
    %v78 = vmul.f32 %v62, %v76
    %v79 = vmul.f32 %v63, %v77
    %v80 = vld [vmem:[%s1] sm:$0x1]
    %v82 = vlaneseq
    %v83 = vshrl.u32 %v82, 7
    %v84 = vsub.s32 0, %v83
    %v85 = vrot.slane %v80, %v84
    %v87 = vmul.f32 %v78, %v85
    %v88 = vmul.f32 %v79, %v85
    %v89 = vld [vmem:[%s2] sm:$0x1]
    %v91 = vlaneseq
    %v92 = vshrl.u32 %v91, 7
    %v93 = vsub.s32 0, %v92
    %v94 = vrot.slane %v89, %v93
    %v96 = vadd.f32 %v87, %v94
    %v97 = vadd.f32 %v88, %v94
    %v98 = vpack.c.bf16 %v97, %v96
    %v99 = vld [vmem:[#allocation5] sm:$0xf]
    %v100 = vld [vmem:[#allocation5 + $0x4] sm:$0xf]
    %v101 = vld [vmem:[#allocation5 + $0x8] sm:$0xf]
    %v102 = vld [vmem:[#allocation5 + $0xc] sm:$0xf]
    %v103 = vld [vmem:[%s4] sm:$0x1]
    %v105 = vlaneseq
    %v106 = vshrl.u32 %v105, 7
    %v107 = vsub.s32 0, %v106
    %v108 = vrot.slane %v103, %v107
    %v114 = vunpack.c.l.b16 %v99
    %v115 = vunpack.c.l.b16 %v100
    %v116 = vunpack.c.l.b16 %v101
    %v117 = vunpack.c.l.b16 %v102
    %v118 = vpack.c.b16 %v115, %v114
    %v119 = vpack.c.b16 %v117, %v116
    %v123 = vsel %vm52, %v98, 0
    %125 = vmatprep.subr.bf16.mxu0 0
    %126 = vmatpush1.bf16.msra.mxu0 0
    %127 = vmatprep.subr.bf16.mxu0 0
    %128 = vmatpush1.bf16.msra.mxu0 0
    %129 = vmatprep.subr.bf16.mxu0 0
    %130 = vmatpush1.bf16.msra.mxu0 0
    %131 = vmatprep.subr.bf16.mxu0 0
    %132 = vmatpush1.bf16.msra.mxu0 0
    %133 = vmatprep.subr.bf16.mxu0 0
    %134 = vmatpush1.bf16.msra.mxu0 0
    %135 = vmatprep.subr.bf16.mxu0 0
    %136 = vmatpush1.bf16.msra.mxu0 0
    %137 = vmatprep.subr.bf16.mxu0 0
    %138 = vmatpush1.bf16.msra.mxu0 %v119
    %139 = vmatprep.subr.bf16.mxu0 0
    %140 = vmatpush1.bf16.msra.mxu0 %v118
    %141 = vmatprep.subr.bf16.mxu0 0
    %142 = vmatpush2.bf16.msra.mxu0 0
    %143 = vmatprep.subr.bf16.mxu0 0
    %144 = vmatpush2.bf16.msra.mxu0 0
    %145 = vmatprep.subr.bf16.mxu0 0
    %146 = vmatpush2.bf16.msra.mxu0 0
    %147 = vmatprep.subr.bf16.mxu0 0
    %148 = vmatpush2.bf16.msra.mxu0 0
    %149 = vmatprep.subr.bf16.mxu0 0
    %150 = vmatpush2.bf16.msra.mxu0 0
    %151 = vmatprep.subr.bf16.mxu0 0
    %152 = vmatpush2.bf16.msra.mxu0 0
    %153 = vmatprep.subr.bf16.mxu0 0
    %154 = vmatpush2.bf16.msra.mxu0 0
    %155 = vmatprep.subr.bf16.mxu0 0
    %156 = vmatpush2.bf16.msra.mxu0 0
    %157 = vmatprep.mubr.bf16.mxu0 0
    %158 = vmatmul.mubr.bf16.gmra.mxu0 %v123
    %v159 = vpop.f32.mrf.mxu0
    %v160 = vadd.f32 %v108, %v159
    %v161 = vpop.f32.mrf.mxu0
    %v162 = vpop.f32.mrf.mxu0
    %v163 = vadd.f32 %v108, %v162
    %v164 = vpop.f32.mrf.mxu0
    %165 = vdwg.mxu0
    %v166 = vpack.c.bf16 %v163, %v160
    %v168 = vunpack.c.l.b16 %v166
    %v169 = vunpack.c.h.b16 %v166
    %v170 = vpack.c.b16 %v168, %v168
    %v171 = vpack.c.b16 %v169, %v169
    %vm174 = vcmask 781312
    %175 = vst.msk [vmem:[#allocation7] sm:$0xf] %vm174, %v170
    %176 = vst.msk [vmem:[#allocation7 + $0x4] sm:$0xf] %vm174, %v171
    // Predicated region
    $region30: #{tpu_custom_call.1} parent=1 // pred_check
      _
    $region31: #{tpu_custom_call.1} parent=1 // pred_check_branch
      %178 = sbr.rel (0) target = $region33
    $region32: #{tpu_custom_call.1} parent=1 // pred_region
      %s180 = ssub.s32 128, 128
      %181 = vsyncadd [#allocation4], %s180
      %s182 = sshll.u32 [#allocation7], 4
      %s183 = int_to_ptr.vmem [resolvable:$true] %s182
      %188 = dma.vmem_to_hbm [thread:$0]  %s183, 128, %s5, [#allocation4], 64, 64, 4
    $region33: #{tpu_custom_call.1} parent=1 // pred_fallthru
      _
    // Predicated region
    $region34: #{tpu_custom_call.1} parent=1 // pred_check
      _
    $region35: #{tpu_custom_call.1} parent=1 // pred_check_branch
      %190 = sbr.rel (0) target = $region37
    $region36: #{tpu_custom_call.1} parent=1 // pred_region
      %191 = dma.done [#allocation4], 128
    $region37: #{tpu_custom_call.1} parent=1 // pred_fallthru
      _
    %192 = vsyncpa [#allocation3], 1
    %193 = vsyncpa [#allocation6], 1
    %194 = vsyncpa [#allocation4], 1

</llo_original>
